<compile_context>
chip_gen: v7x
topology: tpu7x:2x2x1
jax: 0.10.0
libtpu: 0.0.40
codegen_flags: <defaults>
</compile_context>

<pallas_src>
import jax
import jax.numpy as jnp
from jax.experimental import pallas as pl
from jax.experimental.pallas import tpu as pltpu


def _round_up(x, m):
    return ((x + m - 1) // m) * m


def _ranking_kernel(idx_ref, rank_ref, pack_ref, out_ref):
    # idx_ref : (TB, 1)         int32   -- arch index per row of this tile
    # rank_ref: (n_archs, Np)   float32 -- ranking_matrix.T, resident in VMEM
    # pack_ref: (TB, Np)        float32 -- pack tile
    # out_ref : (TB, Np)        float32
    tb = idx_ref.shape[0]
    n_archs = rank_ref.shape[0]
    arch = idx_ref[...]                                          # (TB, 1)
    onehot = (jax.lax.broadcasted_iota(jnp.int32, (tb, n_archs), 1)
              == arch).astype(jnp.float32)                       # (TB, n_archs)
    # Row gather via the (otherwise idle) MXU: rows[b] = rank_t[arch[b], :].
    rows = jnp.dot(onehot, rank_ref[...],
                   preferred_element_type=jnp.float32)           # (TB, Np)
    out_ref[...] = rows * pack_ref[...]


def ranking_net_forward(x, ranking_matrix, n_cards, n_archs, *, tb_max=128):
    """Pallas implementation of RankingNet.forward."""
    B = x.shape[0]
    # Glue (plain JAX): extract arch labels and the pack slice, pre-transpose
    # the parameter so the in-kernel gather is a contiguous row gather.
    # TODO(synk): for production layouts, place `pack` on a 128-column boundary
    # in x so this wrapper slice (an extra HBM pass) can be avoided by passing
    # x directly with an in-kernel static slice.
    arch_idx = x[:, 0].astype(jnp.int32)          # (B,)
    pack = x[:, 1 + n_cards:]                     # (B, n_cards)
    rank_t = ranking_matrix.T                     # (n_archs, n_cards)

    # Lane- / sublane-dense tiling: Np multiple of 128, TB multiple of 8.
    # tb_max=128 keeps double-buffered pack+out tiles small enough for v7x's
    # 64 MiB VMEM even at large n_cards.
    Np = _round_up(n_cards, 128)
    TB = min(tb_max, _round_up(B, 8))
    Bp = _round_up(B, TB)

    if Np != n_cards:
        pack = jnp.pad(pack, ((0, 0), (0, Np - n_cards)))
        rank_t = jnp.pad(rank_t, ((0, 0), (0, Np - n_cards)))
    if Bp != B:
        pack = jnp.pad(pack, ((0, Bp - B), (0, 0)))
        arch_idx = jnp.pad(arch_idx, (0, Bp - B))   # index 0 is valid padding
    arch_idx = arch_idx.reshape(Bp, 1)

    grid = (Bp // TB,)
    f = pl.pallas_call(
        _ranking_kernel,
        out_shape=jax.ShapeDtypeStruct((Bp, Np), jnp.float32),
        grid_spec=pltpu.PrefetchScalarGridSpec(
            num_scalar_prefetch=0,
            grid=grid,
            in_specs=[
                # arch indices for this batch tile
                pl.BlockSpec((TB, 1), lambda i: (i, 0)),
                # ranking_matrix.T resident in VMEM across all steps
                pl.BlockSpec((n_archs, Np), lambda i: (0, 0)),
                # pack tile (streaming HBM traffic)
                pl.BlockSpec((TB, Np), lambda i: (i, 0)),
            ],
            out_specs=pl.BlockSpec((TB, Np), lambda i: (i, 0)),
        ),
        compiler_params=pltpu.CompilerParams(
            dimension_semantics=("parallel",)),
    )
    out = f(arch_idx, rank_t, pack)
    return out[:B, :n_cards]


if __name__ == "__main__":
    # Small, deterministic example shapes consistent with the module.
    B = 8
    N_CARDS = 128
    N_ARCHS = 8

    key = jax.random.PRNGKey(0)
    k_param, k_arch, k_coll, k_pack = jax.random.split(key, 4)

    # Parameter init: torch.rand -> uniform [0, 1), float32.
    ranking_matrix = jax.random.uniform(
        k_param, (N_CARDS, N_ARCHS), dtype=jnp.float32)

    # Build input x = [arch_label, collection(N_CARDS), pack(N_CARDS)].
    arch_labels = jax.random.randint(
        k_arch, (B, 1), 0, N_ARCHS).astype(jnp.float32)
    collection = jax.random.uniform(k_coll, (B, N_CARDS), dtype=jnp.float32)
    pack = jax.random.uniform(k_pack, (B, N_CARDS), dtype=jnp.float32)
    x = jnp.concatenate([arch_labels, collection, pack], axis=1)  # (B, 1+2*N_CARDS)

    out = ranking_net_forward(x, ranking_matrix, N_CARDS, N_ARCHS)
    out = jax.block_until_ready(out)

    # Pure-JAX reference (mirrors the PyTorch forward exactly).
    arch_idx_ref = x[:, 0].astype(jnp.int32)
    pack_ref = x[:, 1 + N_CARDS:]
    ref = ranking_matrix[:, arch_idx_ref].T * pack_ref

    assert out.shape == (B, N_CARDS)
    assert out.dtype == jnp.float32
    assert jnp.allclose(out, ref, atol=1e-6, rtol=1e-6)
    print("KERNEL_OK")
</pallas_src>

<mosaic_0001>
module attributes {stable_mosaic.version = 11 : i64} {
  func.func @_ranking_kernel(%arg0: i32, %arg1: memref<8x1xi32, #tpu.memory_space<vmem>>, %arg2: memref<8x128xf32, #tpu.memory_space<vmem>>, %arg3: memref<8x128xf32, #tpu.memory_space<vmem>>, %arg4: memref<8x128xf32, #tpu.memory_space<vmem>>) attributes {dimension_semantics = [#tpu.dimension_semantics<parallel>], iteration_bounds = array<i64: 1>, scalar_prefetch = 0 : i64, scratch_operands = 0 : i64, tpu.core_type = #tpu.core_type<tc>, window_params = [{transform_indices = @transform_0, window_bounds = array<i64: 8, 1>}, {pipeline_mode = #tpu.pipeline_mode<synchronous>, transform_indices = @transform_1, window_bounds = array<i64: 8, 128>}, {transform_indices = @transform_2, window_bounds = array<i64: 8, 128>}, {transform_indices = @transform_3, window_bounds = array<i64: 8, 128>}]} {
    %c0 = arith.constant 0 : index
    %c0_0 = arith.constant 0 : index
    %0 = vector.load %arg1[%c0, %c0_0] : memref<8x1xi32, #tpu.memory_space<vmem>>, vector<8x1xi32>
    %1 = tpu.iota {dimensions = array<i32: 1>} : vector<8x8xi32>
    %2 = vector.broadcast %0 : vector<8x1xi32> to vector<8x8xi32>
    %3 = arith.cmpi eq, %1, %2 : vector<8x8xi32>
    %4 = arith.extui %3 : vector<8x8xi1> to vector<8x8xi32>
    %5 = arith.sitofp %4 : vector<8x8xi32> to vector<8x8xf32>
    %c0_1 = arith.constant 0 : index
    %c0_2 = arith.constant 0 : index
    %6 = vector.load %arg2[%c0_1, %c0_2] : memref<8x128xf32, #tpu.memory_space<vmem>>, vector<8x128xf32>
    %cst = arith.constant dense<0.000000e+00> : vector<8x128xf32>
    %7 = tpu.matmul %5, %6, %cst {dimension_numbers = #tpu.dot_dimension_numbers<[1], [0], [0], [1], [0, 0, 1, 1], [], []>} : vector<8x8xf32>, vector<8x128xf32>, vector<8x128xf32> -> vector<8x128xf32>
    %c0_3 = arith.constant 0 : index
    %c0_4 = arith.constant 0 : index
    %8 = vector.load %arg3[%c0_3, %c0_4] : memref<8x128xf32, #tpu.memory_space<vmem>>, vector<8x128xf32>
    %9 = arith.mulf %7, %8 : vector<8x128xf32>
    %c0_5 = arith.constant 0 : index
    %c0_6 = arith.constant 0 : index
    %10 = vector.load %arg4[%c0_5, %c0_6] : memref<8x128xf32, #tpu.memory_space<vmem>>, vector<8x128xf32>
    tpu.vector_store %arg4[%c0_5, %c0_6], %9 {strides = array<i32>} : memref<8x128xf32, #tpu.memory_space<vmem>>, vector<8x128xf32>,
    return
  }
  func.func @transform_0(%arg0: i32) -> (i32, i32) {
    %c0_i32 = arith.constant 0 : i32
    %c0_i32_0 = arith.constant 0 : i32
    return %arg0, %c0_i32 : i32, i32
  }
  func.func @transform_1(%arg0: i32) -> (i32, i32) {
    %c0_i32 = arith.constant 0 : i32
    %c0_i32_0 = arith.constant 0 : i32
    %c0_i32_1 = arith.constant 0 : i32
    return %c0_i32, %c0_i32_0 : i32, i32
  }
  func.func @transform_2(%arg0: i32) -> (i32, i32) {
    %c0_i32 = arith.constant 0 : i32
    %c0_i32_0 = arith.constant 0 : i32
    return %arg0, %c0_i32 : i32, i32
  }
  func.func @transform_3(%arg0: i32) -> (i32, i32) {
    %c0_i32 = arith.constant 0 : i32
    %c0_i32_0 = arith.constant 0 : i32
    return %arg0, %c0_i32 : i32, i32
  }
}

</mosaic_0001>

<llo_original>
// kernel: tpu_custom_call.1
$region0: #{tpu_custom_call.1}
  #allocation0 [shape = 'u32[]', space=smem, size = 0x4, offset = 0x4, fixed_abs, tag = 'smem constant byte address 0x4 - core index']
  #allocation1 [shape = 'u32[144,128]{1,0:T(1,128)}', space=vmem, size = 0x12000, scoped, tag = 'internal scratch']
  %s0 = inlined_call_operand.vmem [shape: s32[8,1], index: 0, kind: input, shape index: {}]
  %s1 = inlined_call_operand.vmem [shape: f32[8,128], index: 1, kind: input, shape index: {}]
  %s2 = inlined_call_operand.vmem [shape: f32[8,128], index: 2, kind: input, shape index: {}]
  %s3 = inlined_call_operand.hbm [shape: f32[8,128], index: 3, kind: output, shape index: {}]
  %s4 = sld [smem:[#allocation0]]
  $region22: #{tpu_custom_call.1} parent=0
    _
  %s6 = ssub.s32 1, %s4
  %s7 = scalar_select 0, %s6, %s4
  $region1: #{tpu_custom_call.1} parent=0
    #allocation2 [shape = 'u8[4096]{0}', space=vmem, size = 0x1000, scoped, tag = 'output window, operand 0, single buffered']
    #allocation3 [shape = 's32[1]{0}', space=sflag, size = 0x4, scoped, tag = 'scoped memory for tpu_custom_call.1']
    %8 = vsyncpa [#allocation3], 0
    // Predicated region
    $region2: #{tpu_custom_call.1} parent=1 // pred_check
      _
    $region3: #{tpu_custom_call.1} parent=1 // pred_check_branch
      %10 = sbr.rel (0) target = $region5
    $region4: #{tpu_custom_call.1} parent=1 // pred_region
      _
    $region5: #{tpu_custom_call.1} parent=1 // pred_fallthru
      _
    // Predicated region
    $region6: #{tpu_custom_call.1} parent=1 // pred_check
      _
    $region7: #{tpu_custom_call.1} parent=1 // pred_check_branch
      %12 = sbr.rel (0) target = $region9
    $region8: #{tpu_custom_call.1} parent=1 // pred_region
      _
    $region9: #{tpu_custom_call.1} parent=1 // pred_fallthru
      _
    // Predicated region
    $region10: #{tpu_custom_call.1} parent=1 // pred_check
      _
    $region11: #{tpu_custom_call.1} parent=1 // pred_check_branch
      %14 = sbr.rel (0) target = $region13
    $region12: #{tpu_custom_call.1} parent=1 // pred_region
      _
    $region13: #{tpu_custom_call.1} parent=1 // pred_fallthru
      _
    %v15 = vld [vmem:[%s0] sm:$0xff]
    %v16 = vlaneseq
    %v17 = vand.u32 %v16, 127
    %18 = vset.pattern.permute.xlu0 0
    %19 = vperm.xlu0 %18, %v15
    %v20 = vpop.permute.xlu0 %19
    %vm21 = vcmp.eq.s32.totalorder %v17, %v20
    %v22 = vsel %vm21, 1, 0
    %v23 = vcvt.s32.f32 %v22
    %v24 = vld [vmem:[%s1] sm:$0xff]
    %vm25 = vcmask 64512
    %v27 = vsel %vm25, %v23, 0
    %29 = vmatprep.subr.mxu0 0.0
    %30 = vmatpush1.msra.mxu0 %v24
    %31 = vmatprep.subr.mxu0 0.0
    %32 = vmatpush1.msra.mxu0 0.0
    %33 = vmatprep.subr.mxu0 0.0
    %34 = vmatpush1.msra.mxu0 0.0
    %35 = vmatprep.subr.mxu0 0.0
    %36 = vmatpush1.msra.mxu0 0.0
    %37 = vmatprep.subr.mxu0 0.0
    %38 = vmatpush1.msra.mxu0 0.0
    %39 = vmatprep.subr.mxu0 0.0
    %40 = vmatpush1.msra.mxu0 0.0
    %41 = vmatprep.subr.mxu0 0.0
    %42 = vmatpush1.msra.mxu0 0.0
    %43 = vmatprep.subr.mxu0 0.0
    %44 = vmatpush1.msra.mxu0 0.0
    %45 = vmatprep.subr.mxu0 0.0
    %46 = vmatpush1.msra.mxu0 0.0
    %47 = vmatprep.subr.mxu0 0.0
    %48 = vmatpush1.msra.mxu0 0.0
    %49 = vmatprep.subr.mxu0 0.0
    %50 = vmatpush1.msra.mxu0 0.0
    %51 = vmatprep.subr.mxu0 0.0
    %52 = vmatpush1.msra.mxu0 0.0
    %53 = vmatprep.subr.mxu0 0.0
    %54 = vmatpush1.msra.mxu0 0.0
    %55 = vmatprep.subr.mxu0 0.0
    %56 = vmatpush1.msra.mxu0 0.0
    %57 = vmatprep.subr.mxu0 0.0
    %58 = vmatpush1.msra.mxu0 0.0
    %59 = vmatprep.subr.mxu0 0.0
    %60 = vmatpush1.msra.mxu0 0.0
    %61 = vmatprep.subr.mxu0 0.0
    %62 = vmatpush1.msra.mxu0 0.0
    %63 = vmatprep.subr.mxu0 0.0
    %64 = vmatpush1.msra.mxu0 0.0
    %65 = vmatprep.subr.mxu0 0.0
    %66 = vmatpush1.msra.mxu0 0.0
    %67 = vmatprep.subr.mxu0 0.0
    %68 = vmatpush1.msra.mxu0 0.0
    %69 = vmatprep.subr.mxu0 0.0
    %70 = vmatpush1.msra.mxu0 0.0
    %71 = vmatprep.subr.mxu0 0.0
    %72 = vmatpush1.msra.mxu0 0.0
    %73 = vmatprep.subr.mxu0 0.0
    %74 = vmatpush1.msra.mxu0 0.0
    %75 = vmatprep.subr.mxu0 0.0
    %76 = vmatpush1.msra.mxu0 0.0
    %77 = vmatprep.subr.mxu0 0.0
    %78 = vmatpush1.msra.mxu0 0.0
    %79 = vmatprep.subr.mxu0 0.0
    %80 = vmatpush1.msra.mxu0 0.0
    %81 = vmatprep.subr.mxu0 0.0
    %82 = vmatpush1.msra.mxu0 0.0
    %83 = vmatprep.subr.mxu0 0.0
    %84 = vmatpush1.msra.mxu0 0.0
    %85 = vmatprep.subr.mxu0 0.0
    %86 = vmatpush1.msra.mxu0 0.0
    %87 = vmatprep.subr.mxu0 0.0
    %88 = vmatpush1.msra.mxu0 0.0
    %89 = vmatprep.subr.mxu0 0.0
    %90 = vmatpush1.msra.mxu0 0.0
    %91 = vmatprep.subr.mxu0 0.0
    %92 = vmatpush1.msra.mxu0 0.0
    %93 = vmatprep.mubr.f32.mxu0 0.0
    %94 = vmatmul.mubr.f32.gmra.mrb[0].mxu0 %v27
    %v95 = vpop.f32.mrb[0].mxu0
    %v96 = vadd.f32 0.0, %v95
    %v97 = vpop.f32.mrb[0].mxu0
    %98 = vdwg.mxu0
    %v99 = vld [vmem:[%s2] sm:$0xff]
    %v100 = vmul.f32 %v96, %v99
    %101 = vst [vmem:[#allocation2] sm:$0xff] %v100
    // Predicated region
    $region14: #{tpu_custom_call.1} parent=1 // pred_check
      _
    $region15: #{tpu_custom_call.1} parent=1 // pred_check_branch
      %103 = sbr.rel (0) target = $region17
    $region16: #{tpu_custom_call.1} parent=1 // pred_region
      %s105 = ssub.s32 128, 128
      %106 = vsyncadd [#allocation3], %s105
      %s108 = sshll.u32 [#allocation2], 4
      %s109 = int_to_ptr.vmem [resolvable:$true] %s108
      %111 = dma.vmem_to_hbm [thread:$0]  %s109, 128, %s3, [#allocation3]
    $region17: #{tpu_custom_call.1} parent=1 // pred_fallthru
      _
    // Predicated region
    $region18: #{tpu_custom_call.1} parent=1 // pred_check
      _
    $region19: #{tpu_custom_call.1} parent=1 // pred_check_branch
      %113 = sbr.rel (0) target = $region21
    $region20: #{tpu_custom_call.1} parent=1 // pred_region
      %114 = dma.done [#allocation3], 128
    $region21: #{tpu_custom_call.1} parent=1 // pred_fallthru
      _
    %115 = vsyncpa [#allocation3], 1

</llo_original>
